<compile_context>
chip_gen: v5e
topology: v5e:2x2
jax: 0.10.0
libtpu: 0.0.40
codegen_flags: <defaults>
</compile_context>

<pallas_src>
import jax
import jax.numpy as jnp
import numpy as np
from jax.experimental import pallas as pl
from jax.experimental.pallas import tpu as pltpu


def build_position_encoding_table(d_model: int, max_seq_len: int) -> jnp.ndarray:
    """Deterministic sinusoidal table, identical to the torch __init__."""
    pe = np.array(
        [
            [pos / np.power(10000, 2.0 * (j // 2) / d_model) for j in range(d_model)]
            for pos in range(max_seq_len)
        ],
        dtype=np.float64,
    )
    pe[:, 0::2] = np.sin(pe[:, 0::2])
    pe[:, 1::2] = np.cos(pe[:, 1::2])
    pe = pe.astype(np.float32)
    pad_row = np.zeros((1, d_model), dtype=np.float32)
    return jnp.asarray(np.concatenate([pad_row, pe], axis=0))  # (max_seq_len+1, d_model)


def _pe_broadcast_kernel(pe_ref, out_ref):
    # pe_ref : VMEM (1, FT)  -- lane-tile of the flattened PE slab; its block
    #                           index is constant along the batch grid axis, so
    #                           Pallas fetches each lane-tile only once.
    # out_ref: VMEM (BT, FT) -- BT batch rows of the flattened output; one
    #                           large, lane-dense writeback DMA per grid step.
    out_ref[...] = jnp.broadcast_to(pe_ref[...], out_ref.shape)


def _vmem_capacity_bytes() -> int:
    """Physical VMEM per core; conservative 64 MiB fallback (v7x-sized)."""
    try:
        cap = getattr(pltpu.get_tpu_info(), "vmem_capacity_bytes", None)
        if cap:
            return int(cap)
    except Exception:
        pass
    return 64 * 2**20


def positional_encoding_forward(table: jnp.ndarray, batch_len: int, seq_len: int) -> jnp.ndarray:
    """Equivalent of PositionalEncoding.forward(batch_len, seq_len)."""
    vocab, d_model = table.shape
    assert seq_len + 1 <= vocab, "seq_len exceeds max_seq_len"
    itemsize = 4  # float32
    flat = seq_len * d_model

    # Positions are always 1..seq_len -> contiguous slice of the table rows
    # [1 : seq_len+1], flattened to a single lane axis (free row-major reshape).
    pe_slice = jax.lax.slice(table, (1, 0), (seq_len + 1, d_model))  # (seq, d)
    pe_flat = pe_slice.reshape(1, flat)                              # (1, seq*d)

    # ---- VMEM-aware tile selection ----------------------------------------
    vmem_cap = _vmem_capacity_bytes()
    budget = (vmem_cap * 3) // 4                 # headroom for Mosaic internal scratch
    bt_min = batch_len if batch_len <= 8 else 8  # smallest sublane-legal batch tile

    def _fits(ft_, bt_):
        # 2 (double-buffered) input tiles + 2 (double-buffered) output tiles.
        return (2 * ft_ + 2 * bt_ * ft_) * itemsize <= budget

    if _fits(flat, bt_min):
        ft = flat  # full lane extent -> single lane-dense slab per batch tile
    else:
        # Tile the flattened axis in multiples of 128 lanes so even the minimal
        # batch tile fits physical VMEM (matters for huge seq*d on v7x).
        ft = (budget // (itemsize * (2 + 2 * bt_min)) // 128) * 128
        ft = max(128, min(ft, flat))

    # Grow the batch tile toward multi-MiB writeback DMAs within the budget,
    # keeping BT a multiple of 8 (or the full batch) for unmasked sublane stores.
    target_block_bytes = 16 * 2**20
    bt = max(
        1,
        min(
            batch_len,
            (budget - 2 * ft * itemsize) // (2 * ft * itemsize),
            max(1, target_block_bytes // (ft * itemsize)),
        ),
    )
    if bt < batch_len:
        bt = max(bt_min, (bt // 8) * 8)
    bt = int(min(bt, batch_len))
    ft = int(ft)

    grid = (pl.cdiv(batch_len, bt), pl.cdiv(flat, ft))
    vmem_limit = int(
        min(vmem_cap, max(16 * 2**20, (2 * ft + 2 * bt * ft) * itemsize + (4 << 20)))
    )

    grid_spec = pltpu.PrefetchScalarGridSpec(
        num_scalar_prefetch=0,
        grid=grid,
        in_specs=[
            pl.BlockSpec((1, ft), lambda b, f: (0, f)),
        ],
        out_specs=pl.BlockSpec((bt, ft), lambda b, f: (b, f)),
    )

    out_flat = pl.pallas_call(
        _pe_broadcast_kernel,
        out_shape=jax.ShapeDtypeStruct((batch_len, flat), jnp.float32),
        grid_spec=grid_spec,
        compiler_params=pltpu.CompilerParams(
            dimension_semantics=("parallel", "parallel"),  # shards across TCs on v7x
            vmem_limit_bytes=vmem_limit,
        ),
        cost_estimate=pl.CostEstimate(
            flops=0,
            transcendentals=0,
            bytes_accessed=int((batch_len * flat + flat) * itemsize),
        ),
    )(pe_flat)

    return out_flat.reshape(batch_len, seq_len, d_model)


if __name__ == "__main__":
    d_model = 32
    max_seq_len = 16
    batch_len = 2
    seq_len = 8

    # The PE table is fully determined by the shapes; PRNGKey kept for harness
    # convention only.
    _ = jax.random.PRNGKey(0)
    table = build_position_encoding_table(d_model, max_seq_len)

    out = jax.block_until_ready(positional_encoding_forward(table, batch_len, seq_len))

    # Reference: plain JAX embedding lookup with input_pos = [[1..seq_len]] * batch.
    input_pos = jnp.tile(jnp.arange(1, seq_len + 1, dtype=jnp.int32)[None, :], (batch_len, 1))
    ref = jnp.take(table, input_pos, axis=0)  # [batch, seq, d_model]

    assert out.shape == (batch_len, seq_len, d_model)
    assert out.dtype == jnp.float32
    np.testing.assert_allclose(np.asarray(out), np.asarray(ref), rtol=0, atol=0)

    print("KERNEL_OK")
</pallas_src>

<mosaic_0001>
module attributes {stable_mosaic.version = 11 : i64} {
  func.func @_pe_broadcast_kernel(%arg0: i32, %arg1: i32, %arg2: memref<1x256xf32, #tpu.memory_space<vmem>>, %arg3: memref<2x256xf32, #tpu.memory_space<vmem>>) attributes {dimension_semantics = [#tpu.dimension_semantics<parallel>, #tpu.dimension_semantics<parallel>], iteration_bounds = array<i64: 1, 1>, scalar_prefetch = 0 : i64, scratch_operands = 0 : i64, tpu.core_type = #tpu.core_type<tc>, window_params = [{transform_indices = @transform_0, window_bounds = array<i64: 1, 256>}, {transform_indices = @transform_1, window_bounds = array<i64: 2, 256>}]} {
    %c0 = arith.constant 0 : index
    %c0_0 = arith.constant 0 : index
    %0 = vector.load %arg2[%c0, %c0_0] : memref<1x256xf32, #tpu.memory_space<vmem>>, vector<1x256xf32>
    %1 = vector.shape_cast %0 : vector<1x256xf32> to vector<1x256xf32>
    %2 = vector.broadcast %1 : vector<1x256xf32> to vector<2x256xf32>
    %c0_1 = arith.constant 0 : index
    %c0_2 = arith.constant 0 : index
    %3 = vector.load %arg3[%c0_1, %c0_2] : memref<2x256xf32, #tpu.memory_space<vmem>>, vector<2x256xf32>
    tpu.vector_store %arg3[%c0_1, %c0_2], %2 {strides = array<i32>} : memref<2x256xf32, #tpu.memory_space<vmem>>, vector<2x256xf32>,
    return
  }
  func.func @transform_0(%arg0: i32, %arg1: i32) -> (i32, i32) {
    %c0_i32 = arith.constant 0 : i32
    %c0_i32_0 = arith.constant 0 : i32
    return %c0_i32, %arg1 : i32, i32
  }
  func.func @transform_1(%arg0: i32, %arg1: i32) -> (i32, i32) {
    %c0_i32 = arith.constant 0 : i32
    return %arg0, %arg1 : i32, i32
  }
}

</mosaic_0001>

<llo_original>
// kernel: tpu_custom_call.1
$region0: #{tpu_custom_call.1}
  #allocation0 [shape = 'u32[]', space=smem, size = 0x4, offset = 0x4, fixed_abs, tag = 'smem constant byte address 0x4 - core index']
  #allocation1 [shape = 'u32[72,128]{1,0:T(1,128)}', space=vmem, size = 0x9000, scoped, tag = 'internal scratch']
  %s0 = inlined_call_operand.hbm [shape: f32[1,256], index: 0, kind: input, shape index: {}]
  %s1 = inlined_call_operand.hbm [shape: f32[2,256], index: 1, kind: output, shape index: {}]
  %s2 = sld [smem:[#allocation0]]
  $region18: #{tpu_custom_call.1} parent=0
    _
  %s4 = ssub.s32 1, %s2
  %s5 = scalar_select 0, %s4, %s2
  $region1: #{tpu_custom_call.1} parent=0
    #allocation2 [shape = 'u8[1024]{0}', space=vmem, size = 0x400, scoped, tag = 'input window, operand 0, single buffered']
    #allocation3 [shape = 's32[1]{0}', space=sflag, size = 0x4, scoped, tag = 'scoped memory for tpu_custom_call.1']
    #allocation4 [shape = 's32[1]{0}', space=sflag, size = 0x4, scoped, tag = 'scoped memory for tpu_custom_call.1']
    #allocation5 [shape = 'u8[2048]{0}', space=vmem, size = 0x800, scoped, tag = 'output window, operand 0, single buffered']
    %6 = vsyncpa [#allocation3], 0
    %7 = vsyncpa [#allocation4], 0
    // Predicated region
    $region2: #{tpu_custom_call.1} parent=1 // pred_check
      _
    $region3: #{tpu_custom_call.1} parent=1 // pred_check_branch
      %9 = sbr.rel (0) target = $region5
    $region4: #{tpu_custom_call.1} parent=1 // pred_region
      %11 = vsyncadd [#allocation3], 0
      %s13 = sshll.u32 %s0, 4
      %s14 = int_to_ptr.hbm [resolvable:$true] %s13
      %s15 = sshll.u32 [#allocation2], 4
      %s16 = int_to_ptr.vmem [resolvable:$true] %s15
      %18 = dma.hbm_to_vmem [thread:$0]  %s14, 32, %s16, [#allocation3]
    $region5: #{tpu_custom_call.1} parent=1 // pred_fallthru
      _
    // Predicated region
    $region6: #{tpu_custom_call.1} parent=1 // pred_check
      _
    $region7: #{tpu_custom_call.1} parent=1 // pred_check_branch
      %20 = sbr.rel (0) target = $region9
    $region8: #{tpu_custom_call.1} parent=1 // pred_region
      %22 = dma.done [#allocation3], 32
    $region9: #{tpu_custom_call.1} parent=1 // pred_fallthru
      _
    %v23 = vld [vmem:[#allocation2] sm:$0x3]
    %v25 = vperm.slane %v23, 0
    %v26 = vperm.slane %v23, 1
    %v27 = vrot.slane %v26, 6
    %vm28 = vcmask 1041408
    %v29 = vsel %vm28, %v25, %v27
    %31 = vst [vmem:[#allocation5] sm:$0xf] %v29
    // Predicated region
    $region10: #{tpu_custom_call.1} parent=1 // pred_check
      _
    $region11: #{tpu_custom_call.1} parent=1 // pred_check_branch
      %33 = sbr.rel (0) target = $region13
    $region12: #{tpu_custom_call.1} parent=1 // pred_region
      %35 = vsyncadd [#allocation4], 0
      %s37 = sshll.u32 [#allocation5], 4
      %s38 = int_to_ptr.vmem [resolvable:$true] %s37
      %s39 = sshll.u32 %s1, 4
      %s40 = int_to_ptr.hbm [resolvable:$true] %s39
      %42 = dma.vmem_to_hbm [thread:$0]  %s38, 64, %s40, [#allocation4]
    $region13: #{tpu_custom_call.1} parent=1 // pred_fallthru
      _
    // Predicated region
    $region14: #{tpu_custom_call.1} parent=1 // pred_check
      _
    $region15: #{tpu_custom_call.1} parent=1 // pred_check_branch
      %44 = sbr.rel (0) target = $region17
    $region16: #{tpu_custom_call.1} parent=1 // pred_region
      %46 = dma.done [#allocation4], 64
    $region17: #{tpu_custom_call.1} parent=1 // pred_fallthru
      _
    %47 = vsyncpa [#allocation3], 1
    %48 = vsyncpa [#allocation4], 1

</llo_original>
